<compile_context>
chip_gen: v7x
topology: tpu7x:2x2x1
jax: 0.10.0
libtpu: 0.0.40
codegen_flags: <defaults>
</compile_context>

<pallas_src>
import functools

import jax
import jax.numpy as jnp
from jax.experimental import pallas as pl
from jax.experimental.pallas import tpu as pltpu

LN_EPS = 1e-5  # torch.nn.LayerNorm default


def _round_up(x, m):
    return ((x + m - 1) // m) * m


def _fused_encoder_kernel(x_ref, w1_ref, b1_ref, w2_ref, b2_ref,
                          gamma_ref, beta_ref, o_ref, *, num_layers, e_valid):
    """All encoder layers (MLP-only path), fused, on one row tile.

    x_ref:     (TM, E_pad)        f32 activation tile
    w1_ref:    (L, E_pad, H_pad)  bf16 (MXU operand)
    b1_ref:    (L, 1, H_pad)      f32
    w2_ref:    (L, H_pad, E_pad)  bf16 (MXU operand)
    b2_ref:    (L, 1, E_pad)      f32
    gamma_ref: (L, 1, E_pad)      f32 (zero in padded lanes)
    beta_ref:  (L, 1, E_pad)      f32 (zero in padded lanes)
    o_ref:     (TM, E_pad)
    """
    x = x_ref[...].astype(jnp.float32)
    e_pad = x.shape[-1]
    inv_e = jnp.float32(1.0 / e_valid)
    mxu_dtype = w1_ref.dtype

    need_mask = (e_pad != e_valid)
    if need_mask:
        lane = jax.lax.broadcasted_iota(jnp.int32, x.shape, dimension=1)
        valid = lane < e_valid

    # num_layers is small & static -> unrolled Python loop (scheduler visibility).
    for l in range(num_layers):
        # feedforward: linear1 -> relu -> linear2  (bf16 into MXU, f32 accumulate)
        h = jnp.dot(x.astype(mxu_dtype), w1_ref[l],
                    preferred_element_type=jnp.float32) + b1_ref[l]
        h = jnp.maximum(h, 0.0)
        ff = jnp.dot(h.astype(mxu_dtype), w2_ref[l],
                     preferred_element_type=jnp.float32) + b2_ref[l]

        # residual + LayerNorm (norm1); stats over the valid E lanes only.
        y = x + ff                                   # padded lanes are exactly 0
        mean = jnp.sum(y, axis=-1, keepdims=True) * inv_e
        cent = y - mean
        if need_mask:
            cent = jnp.where(valid, cent, 0.0)       # keep padded lanes out of var
        var = jnp.sum(cent * cent, axis=-1, keepdims=True) * inv_e
        # gamma/beta are zero in padded lanes -> padded output lanes stay 0.
        x = cent * jax.lax.rsqrt(var + LN_EPS) * gamma_ref[l] + beta_ref[l]

    o_ref[...] = x.astype(o_ref.dtype)


def _choose_tile_rows(m_rows, e_pad, h_pad, num_layers,
                      budget_bytes=40 * 1024 * 1024):
    """Pick TM so resident weights + double-buffered tiles + temps fit a
    v7x-safe VMEM budget (64 MiB physical there)."""
    # Resident weights (bf16 matrices) + f32 vectors (sublane-padded estimate).
    weight_bytes = num_layers * (2 * e_pad * h_pad) * 2
    weight_bytes += num_layers * 8 * (h_pad + 3 * e_pad) * 4

    def tile_bytes(tm):
        io = 2 * 2 * tm * e_pad * 4                 # double-buffered f32 in + out
        tmp = 4 * tm * max(e_pad, h_pad) * 4        # in-kernel f32 temporaries
        return io + tmp

    tm = 512
    while tm > 8 and weight_bytes + tile_bytes(tm) > budget_bytes:
        tm //= 2
    tm = max(8, min(tm, _round_up(m_rows, 8)))
    return tm, weight_bytes + tile_bytes(tm)


def mm_context_encoder_forward(in_main, layer_params, *, mxu_dtype=jnp.bfloat16):
    """Forward pass of MMContextEncoder (default: MLP-only layers, eval mode).

    in_main: (batch, seq, embed) float32
    layer_params: list of per-layer dicts (each layer has its own weights).
    Returns (batch, seq, embed) float32.
    """
    B, S, E = in_main.shape
    L = len(layer_params)
    H = layer_params[0]["w1"].shape[1]

    E_pad = _round_up(E, 128)
    H_pad = _round_up(H, 128)
    M = B * S

    TM, vmem_est = _choose_tile_rows(M, E_pad, H_pad, L)
    M_pad = _round_up(M, TM)

    def pad2(a, rows, cols):
        return jnp.pad(a, ((0, rows - a.shape[0]), (0, cols - a.shape[1])))

    # Pack / zero-pad parameters. Zero padding keeps padded lanes exactly zero
    # through matmul+bias, and zero gamma/beta keeps them zero through LN.
    w1 = jnp.stack([pad2(p["w1"], E_pad, H_pad) for p in layer_params]).astype(mxu_dtype)
    w2 = jnp.stack([pad2(p["w2"], H_pad, E_pad) for p in layer_params]).astype(mxu_dtype)
    b1 = jnp.stack([pad2(p["b1"], 1, H_pad) for p in layer_params]).astype(jnp.float32)
    b2 = jnp.stack([pad2(p["b2"], 1, E_pad) for p in layer_params]).astype(jnp.float32)
    gamma = jnp.stack([pad2(p["gamma"], 1, E_pad) for p in layer_params]).astype(jnp.float32)
    beta = jnp.stack([pad2(p["beta"], 1, E_pad) for p in layer_params]).astype(jnp.float32)

    x2d = in_main.reshape(M, E).astype(jnp.float32)
    x2d = jnp.pad(x2d, ((0, M_pad - M), (0, E_pad - E)))

    grid = (M_pad // TM,)
    kernel = functools.partial(_fused_encoder_kernel, num_layers=L, e_valid=E)

    row_spec = pl.BlockSpec((TM, E_pad), lambda i: (i, 0))

    def const_spec(shape):
        return pl.BlockSpec(shape, lambda i, _s=shape: (0,) * len(_s))

    flops = 2 * M_pad * (E_pad * H_pad + H_pad * E_pad) * L
    bytes_accessed = (2 * M_pad * E_pad * 4
                      + 2 * L * E_pad * H_pad * jnp.dtype(mxu_dtype).itemsize
                      + L * (H_pad + 3 * E_pad) * 4)
    vmem_limit = int(min(max(2 * vmem_est, 32 * 1024 * 1024), 48 * 1024 * 1024))

    out = pl.pallas_call(
        kernel,
        out_shape=jax.ShapeDtypeStruct((M_pad, E_pad), jnp.float32),
        grid=grid,
        in_specs=[
            row_spec,                        # x rows (tiled over grid)
            const_spec((L, E_pad, H_pad)),   # w1 (VMEM-resident)
            const_spec((L, 1, H_pad)),       # b1
            const_spec((L, H_pad, E_pad)),   # w2
            const_spec((L, 1, E_pad)),       # b2
            const_spec((L, 1, E_pad)),       # gamma
            const_spec((L, 1, E_pad)),       # beta
        ],
        out_specs=row_spec,
        compiler_params=pltpu.CompilerParams(
            dimension_semantics=("parallel",),
            vmem_limit_bytes=vmem_limit,
        ),
        cost_estimate=pl.CostEstimate(
            flops=flops, transcendentals=0, bytes_accessed=bytes_accessed),
    )(x2d, w1, b1, w2, b2, gamma, beta)

    return out[:M, :E].reshape(B, S, E)


def init_layer_params(key, embedding_dim, hidden_dim):
    """Deterministic synthetic init (shapes match the torch module)."""
    k1, k2, k3, k4 = jax.random.split(key, 4)
    scale1 = 1.0 / jnp.sqrt(embedding_dim)
    scale2 = 1.0 / jnp.sqrt(hidden_dim)
    return {
        # stored as (in, out) so the kernel does x @ W  (== torch x @ W.T with W (out,in))
        "w1": (jax.random.normal(k1, (embedding_dim, hidden_dim), jnp.float32) * scale1),
        "b1": (jax.random.normal(k2, (1, hidden_dim), jnp.float32) * 0.01),
        "w2": (jax.random.normal(k3, (hidden_dim, embedding_dim), jnp.float32) * scale2),
        "b2": (jax.random.normal(k4, (1, embedding_dim), jnp.float32) * 0.01),
        "gamma": jnp.ones((1, embedding_dim), jnp.float32),   # LayerNorm weight init
        "beta": jnp.zeros((1, embedding_dim), jnp.float32),   # LayerNorm bias init
    }


def _reference_forward(in_main, layer_params, mxu_dtype=jnp.bfloat16):
    """Pure-JAX reference with the same bf16-operand / f32-accumulate contract."""
    B, S, E = in_main.shape
    x = in_main.reshape(B * S, E).astype(jnp.float32)
    for p in layer_params:
        h = jnp.dot(x.astype(mxu_dtype), p["w1"].astype(mxu_dtype),
                    preferred_element_type=jnp.float32) + p["b1"]
        h = jnp.maximum(h, 0.0)
        ff = jnp.dot(h.astype(mxu_dtype), p["w2"].astype(mxu_dtype),
                     preferred_element_type=jnp.float32) + p["b2"]
        y = x + ff
        mean = jnp.mean(y, axis=-1, keepdims=True)
        var = jnp.mean((y - mean) ** 2, axis=-1, keepdims=True)
        x = (y - mean) * jax.lax.rsqrt(var + LN_EPS) * p["gamma"] + p["beta"]
    return x.reshape(B, S, E)


if __name__ == "__main__":
    # in_main: (batch_size, seq_length, embedding_dim)
    B, S, E, H = 2, 8, 32, 64
    NUM_LAYERS = 2

    root = jax.random.PRNGKey(0)
    k_in, k_params = jax.random.split(root)
    in_main = jax.random.normal(k_in, (B, S, E), jnp.float32)

    layer_keys = jax.random.split(k_params, NUM_LAYERS)
    layer_params = [init_layer_params(k, E, H) for k in layer_keys]

    out = mm_context_encoder_forward(in_main, layer_params)
    out = jax.block_until_ready(out)

    ref = _reference_forward(in_main, layer_params)
    assert out.shape == (B, S, E), out.shape
    assert jnp.allclose(out, ref, atol=1e-2, rtol=1e-2), "mismatch vs reference"

    print("KERNEL_OK")
</pallas_src>

<mosaic_0001>
module attributes {stable_mosaic.version = 11 : i64} {
  func.func @_fused_encoder_kernel(%arg0: i32, %arg1: memref<16x128xf32, #tpu.memory_space<vmem>>, %arg2: memref<2x128x128xbf16, #tpu.memory_space<vmem>>, %arg3: memref<2x1x128xf32, #tpu.memory_space<vmem>>, %arg4: memref<2x128x128xbf16, #tpu.memory_space<vmem>>, %arg5: memref<2x1x128xf32, #tpu.memory_space<vmem>>, %arg6: memref<2x1x128xf32, #tpu.memory_space<vmem>>, %arg7: memref<2x1x128xf32, #tpu.memory_space<vmem>>, %arg8: memref<16x128xf32, #tpu.memory_space<vmem>>) attributes {dimension_semantics = [#tpu.dimension_semantics<parallel>], iteration_bounds = array<i64: 1>, scalar_prefetch = 0 : i64, scratch_operands = 0 : i64, tpu.core_type = #tpu.core_type<tc>, window_params = [{transform_indices = @transform_0, window_bounds = array<i64: 16, 128>}, {pipeline_mode = #tpu.pipeline_mode<synchronous>, transform_indices = @transform_1, window_bounds = array<i64: 2, 128, 128>}, {pipeline_mode = #tpu.pipeline_mode<synchronous>, transform_indices = @transform_2, window_bounds = array<i64: 2, 1, 128>}, {pipeline_mode = #tpu.pipeline_mode<synchronous>, transform_indices = @transform_3, window_bounds = array<i64: 2, 128, 128>}, {pipeline_mode = #tpu.pipeline_mode<synchronous>, transform_indices = @transform_4, window_bounds = array<i64: 2, 1, 128>}, {pipeline_mode = #tpu.pipeline_mode<synchronous>, transform_indices = @transform_5, window_bounds = array<i64: 2, 1, 128>}, {pipeline_mode = #tpu.pipeline_mode<synchronous>, transform_indices = @transform_6, window_bounds = array<i64: 2, 1, 128>}, {transform_indices = @transform_7, window_bounds = array<i64: 16, 128>}]} {
    %c0 = arith.constant 0 : index
    %c0_0 = arith.constant 0 : index
    %0 = vector.load %arg1[%c0, %c0_0] : memref<16x128xf32, #tpu.memory_space<vmem>>, vector<16x128xf32>
    %1 = tpu.iota {dimensions = array<i32: 1>} : vector<16x128xi32>
    %c32_i32 = arith.constant 32 : i32
    %2 = vector.broadcast %c32_i32 : i32 to vector<16x128xi32>
    %3 = arith.cmpi slt, %1, %2 : vector<16x128xi32>
    %4 = arith.truncf %0 : vector<16x128xf32> to vector<16x128xbf16>
    %c0_1 = arith.constant 0 : index
    %c0_2 = arith.constant 0 : index
    %c0_3 = arith.constant 0 : index
    %5 = vector.load %arg2[%c0_1, %c0_2, %c0_3] : memref<2x128x128xbf16, #tpu.memory_space<vmem>>, vector<1x128x128xbf16>
    %6 = vector.shape_cast %5 : vector<1x128x128xbf16> to vector<128x128xbf16>
    %cst = arith.constant dense<0.000000e+00> : vector<16x128xf32>
    %7 = tpu.matmul %4, %6, %cst {dimension_numbers = #tpu.dot_dimension_numbers<[1], [0], [0], [1], [0, 0, 1, 1], [], []>} : vector<16x128xbf16>, vector<128x128xbf16>, vector<16x128xf32> -> vector<16x128xf32>
    %c0_4 = arith.constant 0 : index
    %c0_5 = arith.constant 0 : index
    %c0_6 = arith.constant 0 : index
    %8 = vector.load %arg3[%c0_4, %c0_5, %c0_6] : memref<2x1x128xf32, #tpu.memory_space<vmem>>, vector<1x1x128xf32>
    %9 = vector.shape_cast %8 : vector<1x1x128xf32> to vector<1x128xf32>
    %10 = vector.broadcast %9 : vector<1x128xf32> to vector<16x128xf32>
    %11 = arith.addf %7, %10 : vector<16x128xf32>
    %cst_7 = arith.constant 0.000000e+00 : f32
    %12 = vector.broadcast %cst_7 : f32 to vector<16x128xf32>
    %13 = arith.maximumf %11, %12 : vector<16x128xf32>
    %14 = arith.truncf %13 : vector<16x128xf32> to vector<16x128xbf16>
    %c0_8 = arith.constant 0 : index
    %c0_9 = arith.constant 0 : index
    %c0_10 = arith.constant 0 : index
    %15 = vector.load %arg4[%c0_8, %c0_9, %c0_10] : memref<2x128x128xbf16, #tpu.memory_space<vmem>>, vector<1x128x128xbf16>
    %16 = vector.shape_cast %15 : vector<1x128x128xbf16> to vector<128x128xbf16>
    %cst_11 = arith.constant dense<0.000000e+00> : vector<16x128xf32>
    %17 = tpu.matmul %14, %16, %cst_11 {dimension_numbers = #tpu.dot_dimension_numbers<[1], [0], [0], [1], [0, 0, 1, 1], [], []>} : vector<16x128xbf16>, vector<128x128xbf16>, vector<16x128xf32> -> vector<16x128xf32>
    %c0_12 = arith.constant 0 : index
    %c0_13 = arith.constant 0 : index
    %c0_14 = arith.constant 0 : index
    %18 = vector.load %arg5[%c0_12, %c0_13, %c0_14] : memref<2x1x128xf32, #tpu.memory_space<vmem>>, vector<1x1x128xf32>
    %19 = vector.shape_cast %18 : vector<1x1x128xf32> to vector<1x128xf32>
    %20 = vector.broadcast %19 : vector<1x128xf32> to vector<16x128xf32>
    %21 = arith.addf %17, %20 : vector<16x128xf32>
    %22 = arith.addf %0, %21 : vector<16x128xf32>
    %cst_15 = arith.constant dense<0.000000e+00> : vector<16xf32>
    %23 = vector.multi_reduction <add>, %22, %cst_15 [1] : vector<16x128xf32> to vector<16xf32>
    %24 = vector.shape_cast %23 : vector<16xf32> to vector<16x1xf32>
    %cst_16 = arith.constant 3.125000e-02 : f32
    %25 = vector.broadcast %cst_16 : f32 to vector<16x1xf32>
    %26 = arith.mulf %24, %25 : vector<16x1xf32>
    %27 = vector.broadcast %26 : vector<16x1xf32> to vector<16x128xf32>
    %28 = arith.subf %22, %27 : vector<16x128xf32>
    %cst_17 = arith.constant 0.000000e+00 : f32
    %29 = vector.broadcast %cst_17 : f32 to vector<16x128xf32>
    %30 = arith.select %3, %28, %29 : vector<16x128xi1>, vector<16x128xf32>
    %31 = arith.mulf %30, %30 : vector<16x128xf32>
    %cst_18 = arith.constant dense<0.000000e+00> : vector<16xf32>
    %32 = vector.multi_reduction <add>, %31, %cst_18 [1] : vector<16x128xf32> to vector<16xf32>
    %33 = vector.shape_cast %32 : vector<16xf32> to vector<16x1xf32>
    %cst_19 = arith.constant 3.125000e-02 : f32
    %34 = vector.broadcast %cst_19 : f32 to vector<16x1xf32>
    %35 = arith.mulf %33, %34 : vector<16x1xf32>
    %cst_20 = arith.constant 9.99999974E-6 : f32
    %36 = vector.broadcast %cst_20 : f32 to vector<16x1xf32>
    %37 = arith.addf %35, %36 : vector<16x1xf32>
    %38 = math.rsqrt %37 : vector<16x1xf32>
    %39 = vector.broadcast %38 : vector<16x1xf32> to vector<16x128xf32>
    %40 = arith.mulf %30, %39 : vector<16x128xf32>
    %c0_21 = arith.constant 0 : index
    %c0_22 = arith.constant 0 : index
    %c0_23 = arith.constant 0 : index
    %41 = vector.load %arg6[%c0_21, %c0_22, %c0_23] : memref<2x1x128xf32, #tpu.memory_space<vmem>>, vector<1x1x128xf32>
    %42 = vector.shape_cast %41 : vector<1x1x128xf32> to vector<1x128xf32>
    %43 = vector.broadcast %42 : vector<1x128xf32> to vector<16x128xf32>
    %44 = arith.mulf %40, %43 : vector<16x128xf32>
    %c0_24 = arith.constant 0 : index
    %c0_25 = arith.constant 0 : index
    %c0_26 = arith.constant 0 : index
    %45 = vector.load %arg7[%c0_24, %c0_25, %c0_26] : memref<2x1x128xf32, #tpu.memory_space<vmem>>, vector<1x1x128xf32>
    %46 = vector.shape_cast %45 : vector<1x1x128xf32> to vector<1x128xf32>
    %47 = vector.broadcast %46 : vector<1x128xf32> to vector<16x128xf32>
    %48 = arith.addf %44, %47 : vector<16x128xf32>
    %49 = arith.truncf %48 : vector<16x128xf32> to vector<16x128xbf16>
    %c1 = arith.constant 1 : index
    %c0_27 = arith.constant 0 : index
    %c0_28 = arith.constant 0 : index
    %50 = vector.load %arg2[%c1, %c0_27, %c0_28] : memref<2x128x128xbf16, #tpu.memory_space<vmem>>, vector<1x128x128xbf16>
    %51 = vector.shape_cast %50 : vector<1x128x128xbf16> to vector<128x128xbf16>
    %cst_29 = arith.constant dense<0.000000e+00> : vector<16x128xf32>
    %52 = tpu.matmul %49, %51, %cst_29 {dimension_numbers = #tpu.dot_dimension_numbers<[1], [0], [0], [1], [0, 0, 1, 1], [], []>} : vector<16x128xbf16>, vector<128x128xbf16>, vector<16x128xf32> -> vector<16x128xf32>
    %c1_30 = arith.constant 1 : index
    %c0_31 = arith.constant 0 : index
    %c0_32 = arith.constant 0 : index
    %53 = vector.load %arg3[%c1_30, %c0_31, %c0_32] : memref<2x1x128xf32, #tpu.memory_space<vmem>>, vector<1x1x128xf32>
    %54 = vector.shape_cast %53 : vector<1x1x128xf32> to vector<1x128xf32>
    %55 = vector.broadcast %54 : vector<1x128xf32> to vector<16x128xf32>
    %56 = arith.addf %52, %55 : vector<16x128xf32>
    %cst_33 = arith.constant 0.000000e+00 : f32
    %57 = vector.broadcast %cst_33 : f32 to vector<16x128xf32>
    %58 = arith.maximumf %56, %57 : vector<16x128xf32>
    %59 = arith.truncf %58 : vector<16x128xf32> to vector<16x128xbf16>
    %c1_34 = arith.constant 1 : index
    %c0_35 = arith.constant 0 : index
    %c0_36 = arith.constant 0 : index
    %60 = vector.load %arg4[%c1_34, %c0_35, %c0_36] : memref<2x128x128xbf16, #tpu.memory_space<vmem>>, vector<1x128x128xbf16>
    %61 = vector.shape_cast %60 : vector<1x128x128xbf16> to vector<128x128xbf16>
    %cst_37 = arith.constant dense<0.000000e+00> : vector<16x128xf32>
    %62 = tpu.matmul %59, %61, %cst_37 {dimension_numbers = #tpu.dot_dimension_numbers<[1], [0], [0], [1], [0, 0, 1, 1], [], []>} : vector<16x128xbf16>, vector<128x128xbf16>, vector<16x128xf32> -> vector<16x128xf32>
    %c1_38 = arith.constant 1 : index
    %c0_39 = arith.constant 0 : index
    %c0_40 = arith.constant 0 : index
    %63 = vector.load %arg5[%c1_38, %c0_39, %c0_40] : memref<2x1x128xf32, #tpu.memory_space<vmem>>, vector<1x1x128xf32>
    %64 = vector.shape_cast %63 : vector<1x1x128xf32> to vector<1x128xf32>
    %65 = vector.broadcast %64 : vector<1x128xf32> to vector<16x128xf32>
    %66 = arith.addf %62, %65 : vector<16x128xf32>
    %67 = arith.addf %48, %66 : vector<16x128xf32>
    %cst_41 = arith.constant dense<0.000000e+00> : vector<16xf32>
    %68 = vector.multi_reduction <add>, %67, %cst_41 [1] : vector<16x128xf32> to vector<16xf32>
    %69 = vector.shape_cast %68 : vector<16xf32> to vector<16x1xf32>
    %cst_42 = arith.constant 3.125000e-02 : f32
    %70 = vector.broadcast %cst_42 : f32 to vector<16x1xf32>
    %71 = arith.mulf %69, %70 : vector<16x1xf32>
    %72 = vector.broadcast %71 : vector<16x1xf32> to vector<16x128xf32>
    %73 = arith.subf %67, %72 : vector<16x128xf32>
    %cst_43 = arith.constant 0.000000e+00 : f32
    %74 = vector.broadcast %cst_43 : f32 to vector<16x128xf32>
    %75 = arith.select %3, %73, %74 : vector<16x128xi1>, vector<16x128xf32>
    %76 = arith.mulf %75, %75 : vector<16x128xf32>
    %cst_44 = arith.constant dense<0.000000e+00> : vector<16xf32>
    %77 = vector.multi_reduction <add>, %76, %cst_44 [1] : vector<16x128xf32> to vector<16xf32>
    %78 = vector.shape_cast %77 : vector<16xf32> to vector<16x1xf32>
    %cst_45 = arith.constant 3.125000e-02 : f32
    %79 = vector.broadcast %cst_45 : f32 to vector<16x1xf32>
    %80 = arith.mulf %78, %79 : vector<16x1xf32>
    %cst_46 = arith.constant 9.99999974E-6 : f32
    %81 = vector.broadcast %cst_46 : f32 to vector<16x1xf32>
    %82 = arith.addf %80, %81 : vector<16x1xf32>
    %83 = math.rsqrt %82 : vector<16x1xf32>
    %84 = vector.broadcast %83 : vector<16x1xf32> to vector<16x128xf32>
    %85 = arith.mulf %75, %84 : vector<16x128xf32>
    %c1_47 = arith.constant 1 : index
    %c0_48 = arith.constant 0 : index
    %c0_49 = arith.constant 0 : index
    %86 = vector.load %arg6[%c1_47, %c0_48, %c0_49] : memref<2x1x128xf32, #tpu.memory_space<vmem>>, vector<1x1x128xf32>
    %87 = vector.shape_cast %86 : vector<1x1x128xf32> to vector<1x128xf32>
    %88 = vector.broadcast %87 : vector<1x128xf32> to vector<16x128xf32>
    %89 = arith.mulf %85, %88 : vector<16x128xf32>
    %c1_50 = arith.constant 1 : index
    %c0_51 = arith.constant 0 : index
    %c0_52 = arith.constant 0 : index
    %90 = vector.load %arg7[%c1_50, %c0_51, %c0_52] : memref<2x1x128xf32, #tpu.memory_space<vmem>>, vector<1x1x128xf32>
    %91 = vector.shape_cast %90 : vector<1x1x128xf32> to vector<1x128xf32>
    %92 = vector.broadcast %91 : vector<1x128xf32> to vector<16x128xf32>
    %93 = arith.addf %89, %92 : vector<16x128xf32>
    %c0_53 = arith.constant 0 : index
    %c0_54 = arith.constant 0 : index
    %94 = vector.load %arg8[%c0_53, %c0_54] : memref<16x128xf32, #tpu.memory_space<vmem>>, vector<16x128xf32>
    tpu.vector_store %arg8[%c0_53, %c0_54], %93 {strides = array<i32>} : memref<16x128xf32, #tpu.memory_space<vmem>>, vector<16x128xf32>,
    return
  }
  func.func @transform_0(%arg0: i32) -> (i32, i32) {
    %c0_i32 = arith.constant 0 : i32
    %c0_i32_0 = arith.constant 0 : i32
    return %arg0, %c0_i32 : i32, i32
  }
  func.func @transform_1(%arg0: i32) -> (i32, i32, i32) {
    %c0_i32 = arith.constant 0 : i32
    %c0_i32_0 = arith.constant 0 : i32
    %c0_i32_1 = arith.constant 0 : i32
    %c0_i32_2 = arith.constant 0 : i32
    return %c0_i32, %c0_i32_0, %c0_i32_1 : i32, i32, i32
  }
  func.func @transform_2(%arg0: i32) -> (i32, i32, i32) {
    %c0_i32 = arith.constant 0 : i32
    %c0_i32_0 = arith.constant 0 : i32
    %c0_i32_1 = arith.constant 0 : i32
    %c0_i32_2 = arith.constant 0 : i32
    return %c0_i32, %c0_i32_0, %c0_i32_1 : i32, i32, i32
  }
  func.func @transform_3(%arg0: i32) -> (i32, i32, i32) {
    %c0_i32 = arith.constant 0 : i32
    %c0_i32_0 = arith.constant 0 : i32
    %c0_i32_1 = arith.constant 0 : i32
    %c0_i32_2 = arith.constant 0 : i32
    return %c0_i32, %c0_i32_0, %c0_i32_1 : i32, i32, i32
  }
  func.func @transform_4(%arg0: i32) -> (i32, i32, i32) {
    %c0_i32 = arith.constant 0 : i32
    %c0_i32_0 = arith.constant 0 : i32
    %c0_i32_1 = arith.constant 0 : i32
    %c0_i32_2 = arith.constant 0 : i32
    return %c0_i32, %c0_i32_0, %c0_i32_1 : i32, i32, i32
  }
  func.func @transform_5(%arg0: i32) -> (i32, i32, i32) {
    %c0_i32 = arith.constant 0 : i32
    %c0_i32_0 = arith.constant 0 : i32
    %c0_i32_1 = arith.constant 0 : i32
    %c0_i32_2 = arith.constant 0 : i32
    return %c0_i32, %c0_i32_0, %c0_i32_1 : i32, i32, i32
  }
  func.func @transform_6(%arg0: i32) -> (i32, i32, i32) {
    %c0_i32 = arith.constant 0 : i32
    %c0_i32_0 = arith.constant 0 : i32
    %c0_i32_1 = arith.constant 0 : i32
    %c0_i32_2 = arith.constant 0 : i32
    return %c0_i32, %c0_i32_0, %c0_i32_1 : i32, i32, i32
  }
  func.func @transform_7(%arg0: i32) -> (i32, i32) {
    %c0_i32 = arith.constant 0 : i32
    %c0_i32_0 = arith.constant 0 : i32
    return %arg0, %c0_i32 : i32, i32
  }
}

</mosaic_0001>

<llo_original>
// kernel: tpu_custom_call.1
$region0: #{tpu_custom_call.1}
  #allocation0 [shape = 'u32[]', space=smem, size = 0x4, offset = 0x4, fixed_abs, tag = 'smem constant byte address 0x4 - core index']
  #allocation1 [shape = 'u32[144,128]{1,0:T(1,128)}', space=vmem, size = 0x12000, scoped, tag = 'internal scratch']
  %s0 = inlined_call_operand.hbm [shape: f32[16,128], index: 0, kind: input, shape index: {}]
  %s1 = inlined_call_operand.hbm [shape: bf16[2,128,128], index: 1, kind: input, shape index: {}]
  %s2 = inlined_call_operand.vmem [shape: f32[2,1,128], index: 2, kind: input, shape index: {}]
  %s3 = inlined_call_operand.hbm [shape: bf16[2,128,128], index: 3, kind: input, shape index: {}]
  %s4 = inlined_call_operand.vmem [shape: f32[2,1,128], index: 4, kind: input, shape index: {}]
  %s5 = inlined_call_operand.vmem [shape: f32[2,1,128], index: 5, kind: input, shape index: {}]
  %s6 = inlined_call_operand.vmem [shape: f32[2,1,128], index: 6, kind: input, shape index: {}]
  %s7 = inlined_call_operand.hbm [shape: f32[16,128], index: 7, kind: output, shape index: {}]
  %s8 = sld [smem:[#allocation0]]
  $region50: #{tpu_custom_call.1} parent=0
    _
  %s10 = ssub.s32 1, %s8
  %s11 = scalar_select 0, %s10, %s8
  $region1: #{tpu_custom_call.1} parent=0
    #allocation2 [shape = 'u8[8192]{0}', space=vmem, size = 0x2000, scoped, tag = 'input window, operand 0, single buffered']
    #allocation3 [shape = 's32[1]{0}', space=sflag, size = 0x4, scoped, tag = 'scoped memory for tpu_custom_call.1']
    #allocation4 [shape = 's32[1]{0}', space=sflag, size = 0x4, scoped, tag = 'scoped memory for tpu_custom_call.1']
    #allocation5 [shape = 'u8[65536]{0}', space=vmem, size = 0x10000, scoped, tag = 'input window, operand 1, single buffered']
    #allocation6 [shape = 's32[1]{0}', space=sflag, size = 0x4, scoped, tag = 'scoped memory for tpu_custom_call.1']
    #allocation7 [shape = 'u8[65536]{0}', space=vmem, size = 0x10000, scoped, tag = 'input window, operand 3, single buffered']
    #allocation8 [shape = 'u8[8192]{0}', space=vmem, size = 0x2000, scoped, tag = 'output window, operand 0, single buffered']
    %12 = vsyncpa [#allocation3], 0
    %13 = vsyncpa [#allocation6], 0
    %14 = vsyncpa [#allocation4], 0
    // Predicated region
    $region2: #{tpu_custom_call.1} parent=1 // pred_check
      _
    $region3: #{tpu_custom_call.1} parent=1 // pred_check_branch
      %16 = sbr.rel (0) target = $region5
    $region4: #{tpu_custom_call.1} parent=1 // pred_region
      %s18 = ssub.s32 256, 256
      %19 = vsyncadd [#allocation3], %s18
      %s20 = sshll.u32 [#allocation2], 4
      %s21 = int_to_ptr.vmem [resolvable:$true] %s20
      %26 = dma.hbm_to_vmem [thread:$0]  %s0, 256, %s21, [#allocation3], 128, 128, 8
    $region5: #{tpu_custom_call.1} parent=1 // pred_fallthru
      _
    // Predicated region
    $region6: #{tpu_custom_call.1} parent=1 // pred_check
      _
    $region7: #{tpu_custom_call.1} parent=1 // pred_check_branch
      %28 = sbr.rel (0) target = $region9
    $region8: #{tpu_custom_call.1} parent=1 // pred_region
      %s30 = ssub.s32 2048, 2048
      %31 = vsyncadd [#allocation6], %s30
      %s32 = sshll.u32 [#allocation5], 4
      %s33 = int_to_ptr.vmem [resolvable:$true] %s32
      %38 = dma.hbm_to_vmem [thread:$0]  %s1, 2048, %s33, [#allocation6], 64, 64, 4
    $region9: #{tpu_custom_call.1} parent=1 // pred_fallthru
      _
    // Predicated region
    $region10: #{tpu_custom_call.1} parent=1 // pred_check
      _
    $region11: #{tpu_custom_call.1} parent=1 // pred_check_branch
      %40 = sbr.rel (0) target = $region13
    $region12: #{tpu_custom_call.1} parent=1 // pred_region
      _
    $region13: #{tpu_custom_call.1} parent=1 // pred_fallthru
      _
    // Predicated region
    $region14: #{tpu_custom_call.1} parent=1 // pred_check
      _
    $region15: #{tpu_custom_call.1} parent=1 // pred_check_branch
      %42 = sbr.rel (0) target = $region17
    $region16: #{tpu_custom_call.1} parent=1 // pred_region
      %s44 = ssub.s32 2048, 2048
      %45 = vsyncadd [#allocation6], %s44
      %s46 = sshll.u32 [#allocation7], 4
      %s47 = int_to_ptr.vmem [resolvable:$true] %s46
      %52 = dma.hbm_to_vmem [thread:$0]  %s3, 2048, %s47, [#allocation6], 64, 64, 4
    $region17: #{tpu_custom_call.1} parent=1 // pred_fallthru
      _
    // Predicated region
    $region18: #{tpu_custom_call.1} parent=1 // pred_check
      _
    $region19: #{tpu_custom_call.1} parent=1 // pred_check_branch
      %54 = sbr.rel (0) target = $region21
    $region20: #{tpu_custom_call.1} parent=1 // pred_region
      _
    $region21: #{tpu_custom_call.1} parent=1 // pred_fallthru
      _
    // Predicated region
    $region22: #{tpu_custom_call.1} parent=1 // pred_check
      _
    $region23: #{tpu_custom_call.1} parent=1 // pred_check_branch
      %56 = sbr.rel (0) target = $region25
    $region24: #{tpu_custom_call.1} parent=1 // pred_region
      _
    $region25: #{tpu_custom_call.1} parent=1 // pred_fallthru
      _
    // Predicated region
    $region26: #{tpu_custom_call.1} parent=1 // pred_check
      _
    $region27: #{tpu_custom_call.1} parent=1 // pred_check_branch
      %58 = sbr.rel (0) target = $region29
    $region28: #{tpu_custom_call.1} parent=1 // pred_region
      _
    $region29: #{tpu_custom_call.1} parent=1 // pred_fallthru
      _
    // Predicated region
    $region30: #{tpu_custom_call.1} parent=1 // pred_check
      _
    $region31: #{tpu_custom_call.1} parent=1 // pred_check_branch
      %60 = sbr.rel (0) target = $region33
    $region32: #{tpu_custom_call.1} parent=1 // pred_region
      %61 = dma.done [#allocation3], 256
    $region33: #{tpu_custom_call.1} parent=1 // pred_fallthru
      _
    // Predicated region
    $region34: #{tpu_custom_call.1} parent=1 // pred_check
      _
    $region35: #{tpu_custom_call.1} parent=1 // pred_check_branch
      %63 = sbr.rel (0) target = $region37
    $region36: #{tpu_custom_call.1} parent=1 // pred_region
      %64 = dma.done [#allocation6], 2048
    $region37: #{tpu_custom_call.1} parent=1 // pred_fallthru
      _
    // Predicated region
    $region38: #{tpu_custom_call.1} parent=1 // pred_check
      _
    $region39: #{tpu_custom_call.1} parent=1 // pred_check_branch
      %66 = sbr.rel (0) target = $region41
    $region40: #{tpu_custom_call.1} parent=1 // pred_region
      %67 = dma.done [#allocation6], 2048
    $region41: #{tpu_custom_call.1} parent=1 // pred_fallthru
      _
    %v69 = vld [vmem:[#allocation2] sm:$0xff]
    %v70 = vld [vmem:[#allocation2 + $0x8] sm:$0xff]
    %v71 = vlaneseq
    %v72 = vand.u32 %v71, 127
    %vm73 = vcmp.lt.s32.totalorder %v72, 32
    %v74 = vpack.c.bf16 %v70, %v69
    %v75 = vld [vmem:[#allocation5] sm:$0xf]
    %v76 = vld [vmem:[#allocation5 + $0x4] sm:$0xf]
    %v77 = vld [vmem:[#allocation5 + $0x8] sm:$0xf]
    %v78 = vld [vmem:[#allocation5 + $0xc] sm:$0xf]
    %v79 = vld [vmem:[#allocation5 + $0x10] sm:$0xf]
    %v80 = vld [vmem:[#allocation5 + $0x14] sm:$0xf]
    %v81 = vld [vmem:[#allocation5 + $0x18] sm:$0xf]
    %v82 = vld [vmem:[#allocation5 + $0x1c] sm:$0xf]
    %v83 = vld [vmem:[#allocation5 + $0x20] sm:$0xf]
    %v84 = vld [vmem:[#allocation5 + $0x24] sm:$0xf]
    %v85 = vld [vmem:[#allocation5 + $0x28] sm:$0xf]
    %v86 = vld [vmem:[#allocation5 + $0x2c] sm:$0xf]
    %v87 = vld [vmem:[#allocation5 + $0x30] sm:$0xf]
    %v88 = vld [vmem:[#allocation5 + $0x34] sm:$0xf]
    %v89 = vld [vmem:[#allocation5 + $0x38] sm:$0xf]
    %v90 = vld [vmem:[#allocation5 + $0x3c] sm:$0xf]
    %v91 = vld [vmem:[%s2] sm:$0x1]
    %v93 = vlaneseq
    %v94 = vshrl.u32 %v93, 7
    %v95 = vsub.s32 0, %v94
    %v96 = vrot.slane %v91, %v95
    %v114 = vunpack.c.l.b16 %v75
    %v115 = vunpack.c.l.b16 %v76
    %v116 = vunpack.c.l.b16 %v77
    %v117 = vunpack.c.l.b16 %v78
    %v118 = vunpack.c.l.b16 %v79
    %v119 = vunpack.c.l.b16 %v80
    %v120 = vunpack.c.l.b16 %v81
    %v121 = vunpack.c.l.b16 %v82
    %v122 = vunpack.c.l.b16 %v83
    %v123 = vunpack.c.l.b16 %v84
    %v124 = vunpack.c.l.b16 %v85
    %v125 = vunpack.c.l.b16 %v86
    %v126 = vunpack.c.l.b16 %v87
    %v127 = vunpack.c.l.b16 %v88
    %v128 = vunpack.c.l.b16 %v89
    %v129 = vunpack.c.l.b16 %v90
    %v130 = vpack.c.b16 %v115, %v114
    %v131 = vpack.c.b16 %v117, %v116
    %v132 = vpack.c.b16 %v119, %v118
    %v133 = vpack.c.b16 %v121, %v120
    %v134 = vpack.c.b16 %v123, %v122
    %v135 = vpack.c.b16 %v125, %v124
    %v136 = vpack.c.b16 %v127, %v126
    %v137 = vpack.c.b16 %v129, %v128
    %146 = vmatprep.subr.bf16.mxu0 0
    %147 = vmatpush1.bf16.msra.mxu0 %v130
    %148 = vmatprep.subr.bf16.mxu0 0
    %149 = vmatpush1.bf16.msra.mxu0 %v131
    %150 = vmatprep.subr.bf16.mxu0 0
    %151 = vmatpush1.bf16.msra.mxu0 %v132
    %152 = vmatprep.subr.bf16.mxu0 0
    %153 = vmatpush1.bf16.msra.mxu0 %v133
    %154 = vmatprep.subr.bf16.mxu0 0
    %155 = vmatpush1.bf16.msra.mxu0 %v134
    %156 = vmatprep.subr.bf16.mxu0 0
    %157 = vmatpush1.bf16.msra.mxu0 %v135
    %158 = vmatprep.subr.bf16.mxu0 0
    %159 = vmatpush1.bf16.msra.mxu0 %v136
    %160 = vmatprep.subr.bf16.mxu0 0
    %161 = vmatpush1.bf16.msra.mxu0 %v137
    %162 = vmatprep.subr.bf16.mxu0 0
    %163 = vmatpush1.bf16.msra.mxu0 0
    %164 = vmatprep.subr.bf16.mxu0 0
    %165 = vmatpush1.bf16.msra.mxu0 0
    %166 = vmatprep.subr.bf16.mxu0 0
    %167 = vmatpush1.bf16.msra.mxu0 0
    %168 = vmatprep.subr.bf16.mxu0 0
    %169 = vmatpush1.bf16.msra.mxu0 0
    %170 = vmatprep.subr.bf16.mxu0 0
    %171 = vmatpush1.bf16.msra.mxu0 0
    %172 = vmatprep.subr.bf16.mxu0 0
    %173 = vmatpush1.bf16.msra.mxu0 0
    %174 = vmatprep.subr.bf16.mxu0 0
    %175 = vmatpush1.bf16.msra.mxu0 0
    %176 = vmatprep.subr.bf16.mxu0 0
    %177 = vmatpush1.bf16.msra.mxu0 0
    %178 = vmatprep.mubr.bf16.mxu0 0
    %179 = vmatmul.mubr.bf16.gmra.mrb[0].mxu0 %v74
    %v180 = vpop.f32.mrb[0].mxu0
    %v181 = vadd.f32 %v96, %v180
    %v182 = vpop.f32.mrb[0].mxu0
    %v183 = vpop.f32.mrb[0].mxu0
    %v184 = vadd.f32 %v96, %v183
    %v185 = vpop.f32.mrb[0].mxu0
    %186 = vdwg.mxu0
    %v187 = vmax.f32 %v181, 0.0
    %v188 = vmax.f32 %v184, 0.0
    %v189 = vpack.c.bf16 %v188, %v187
    %v190 = vld [vmem:[#allocation7] sm:$0xf]
    %v191 = vld [vmem:[#allocation7 + $0x4] sm:$0xf]
    %v192 = vld [vmem:[#allocation7 + $0x8] sm:$0xf]
    %v193 = vld [vmem:[#allocation7 + $0xc] sm:$0xf]
    %v194 = vld [vmem:[#allocation7 + $0x10] sm:$0xf]
    %v195 = vld [vmem:[#allocation7 + $0x14] sm:$0xf]
    %v196 = vld [vmem:[#allocation7 + $0x18] sm:$0xf]
    %v197 = vld [vmem:[#allocation7 + $0x1c] sm:$0xf]
    %v198 = vld [vmem:[#allocation7 + $0x20] sm:$0xf]
    %v199 = vld [vmem:[#allocation7 + $0x24] sm:$0xf]
    %v200 = vld [vmem:[#allocation7 + $0x28] sm:$0xf]
    %v201 = vld [vmem:[#allocation7 + $0x2c] sm:$0xf]
    %v202 = vld [vmem:[#allocation7 + $0x30] sm:$0xf]
    %v203 = vld [vmem:[#allocation7 + $0x34] sm:$0xf]
    %v204 = vld [vmem:[#allocation7 + $0x38] sm:$0xf]
    %v205 = vld [vmem:[#allocation7 + $0x3c] sm:$0xf]
    %v206 = vld [vmem:[%s4] sm:$0x1]
    %v208 = vlaneseq
    %v209 = vshrl.u32 %v208, 7
    %v210 = vsub.s32 0, %v209
    %v211 = vrot.slane %v206, %v210
    %v229 = vunpack.c.l.b16 %v190
    %v230 = vunpack.c.l.b16 %v191
    %v231 = vunpack.c.l.b16 %v192
    %v232 = vunpack.c.l.b16 %v193
    %v233 = vunpack.c.l.b16 %v194
    %v234 = vunpack.c.l.b16 %v195
    %v235 = vunpack.c.l.b16 %v196
    %v236 = vunpack.c.l.b16 %v197
    %v237 = vunpack.c.l.b16 %v198
    %v238 = vunpack.c.l.b16 %v199
    %v239 = vunpack.c.l.b16 %v200
    %v240 = vunpack.c.l.b16 %v201
    %v241 = vunpack.c.l.b16 %v202
    %v242 = vunpack.c.l.b16 %v203
    %v243 = vunpack.c.l.b16 %v204
    %v244 = vunpack.c.l.b16 %v205
    %v245 = vpack.c.b16 %v230, %v229
    %v246 = vpack.c.b16 %v232, %v231
    %v247 = vpack.c.b16 %v234, %v233
    %v248 = vpack.c.b16 %v236, %v235
    %v249 = vpack.c.b16 %v238, %v237
    %v250 = vpack.c.b16 %v240, %v239
    %v251 = vpack.c.b16 %v242, %v241
    %v252 = vpack.c.b16 %v244, %v243
    %261 = vmatprep.subr.bf16.mxu0 0
    %262 = vmatpush1.bf16.msra.mxu0 %v245
    %263 = vmatprep.subr.bf16.mxu0 0
    %264 = vmatpush1.bf16.msra.mxu0 %v246
    %265 = vmatprep.subr.bf16.mxu0 0
    %266 = vmatpush1.bf16.msra.mxu0 %v247
    %267 = vmatprep.subr.bf16.mxu0 0
    %268 = vmatpush1.bf16.msra.mxu0 %v248
    %269 = vmatprep.subr.bf16.mxu0 0
    %270 = vmatpush1.bf16.msra.mxu0 %v249
    %271 = vmatprep.subr.bf16.mxu0 0
    %272 = vmatpush1.bf16.msra.mxu0 %v250
    %273 = vmatprep.subr.bf16.mxu0 0
    %274 = vmatpush1.bf16.msra.mxu0 %v251
    %275 = vmatprep.subr.bf16.mxu0 0
    %276 = vmatpush1.bf16.msra.mxu0 %v252
    %277 = vmatprep.subr.bf16.mxu0 0
    %278 = vmatpush1.bf16.msra.mxu0 0
    %279 = vmatprep.subr.bf16.mxu0 0
    %280 = vmatpush1.bf16.msra.mxu0 0
    %281 = vmatprep.subr.bf16.mxu0 0
    %282 = vmatpush1.bf16.msra.mxu0 0
    %283 = vmatprep.subr.bf16.mxu0 0
    %284 = vmatpush1.bf16.msra.mxu0 0
    %285 = vmatprep.subr.bf16.mxu0 0
    %286 = vmatpush1.bf16.msra.mxu0 0
    %287 = vmatprep.subr.bf16.mxu0 0
    %288 = vmatpush1.bf16.msra.mxu0 0
    %289 = vmatprep.subr.bf16.mxu0 0
    %290 = vmatpush1.bf16.msra.mxu0 0
    %291 = vmatprep.subr.bf16.mxu0 0
    %292 = vmatpush1.bf16.msra.mxu0 0
    %293 = vmatprep.mubr.bf16.mxu0 0
    %294 = vmatmul.mubr.bf16.gmra.mrb[0].mxu0 %v189
    %v295 = vpop.f32.mrb[0].mxu0
    %v296 = vadd.f32 %v211, %v295
    %v297 = vpop.f32.mrb[0].mxu0
    %v298 = vpop.f32.mrb[0].mxu0
    %v299 = vadd.f32 %v211, %v298
    %v300 = vpop.f32.mrb[0].mxu0
    %301 = vdwg.mxu0
    %v302 = vadd.f32 %v69, %v296
    %v303 = vadd.f32 %v70, %v299
    %304 = vadd.xlane.f32.xlu0 %v302
    %v305 = vpop.xlane.xlu0 %304
    %306 = vadd.xlane.f32.xlu0 %v303
    %v307 = vpop.xlane.xlu0 %306
    %v308 = vmul.f32 %v305, 0.03125
    %v309 = vmul.f32 %v307, 0.03125
    %v310 = vsub.f32 %v302, %v308
    %v311 = vsub.f32 %v303, %v309
    %v312 = vsel %vm73, %v310, 0.0
    %v313 = vsel %vm73, %v311, 0.0
    %v314 = vmul.f32 %v312, %v312
    %v315 = vmul.f32 %v313, %v313
    %316 = vadd.xlane.f32.xlu0 %v314
    %v317 = vpop.xlane.xlu0 %316
    %318 = vadd.xlane.f32.xlu0 %v315
    %v319 = vpop.xlane.xlu0 %318
    %v320 = vmul.f32 %v317, 0.03125
    %v321 = vmul.f32 %v319, 0.03125
    %v322 = vadd.f32 %v320, 1e-05
    %v323 = vadd.f32 %v321, 1e-05
    %v324 = vrsqrt.pop %v322
    %v325 = vrsqrt.pop %v323
    %v326 = vmul.f32 %v312, %v324
    %v327 = vmul.f32 %v313, %v325
    %v328 = vld [vmem:[%s5] sm:$0x1]
    %v330 = vlaneseq
    %v331 = vshrl.u32 %v330, 7
    %v332 = vsub.s32 0, %v331
    %v333 = vrot.slane %v328, %v332
    %v335 = vmul.f32 %v326, %v333
    %v336 = vmul.f32 %v327, %v333
    %v337 = vld [vmem:[%s6] sm:$0x1]
    %v339 = vlaneseq
    %v340 = vshrl.u32 %v339, 7
    %v341 = vsub.s32 0, %v340
    %v342 = vrot.slane %v337, %v341
    %v344 = vadd.f32 %v335, %v342
    %v345 = vadd.f32 %v336, %v342
    %v346 = vpack.c.bf16 %v345, %v344
    %s347 = scalar_lea.vmem [#allocation5], 64
    %v348 = vld [vmem:[%s347] sm:$0xf]
    %v349 = vld [vmem:[%s347 + $0x4] sm:$0xf]
    %v350 = vld [vmem:[%s347 + $0x8] sm:$0xf]
    %v351 = vld [vmem:[%s347 + $0xc] sm:$0xf]
    %v352 = vld [vmem:[%s347 + $0x10] sm:$0xf]
    %v353 = vld [vmem:[%s347 + $0x14] sm:$0xf]
    %v354 = vld [vmem:[%s347 + $0x18] sm:$0xf]
    %v355 = vld [vmem:[%s347 + $0x1c] sm:$0xf]
    %v356 = vld [vmem:[%s347 + $0x20] sm:$0xf]
    %v357 = vld [vmem:[%s347 + $0x24] sm:$0xf]
    %v358 = vld [vmem:[%s347 + $0x28] sm:$0xf]
    %v359 = vld [vmem:[%s347 + $0x2c] sm:$0xf]
    %v360 = vld [vmem:[%s347 + $0x30] sm:$0xf]
    %v361 = vld [vmem:[%s347 + $0x34] sm:$0xf]
    %v362 = vld [vmem:[%s347 + $0x38] sm:$0xf]
    %v363 = vld [vmem:[%s347 + $0x3c] sm:$0xf]
    %s364 = scalar_lea.vmem %s2, 1
    %v365 = vld [vmem:[%s364] sm:$0x1]
    %v367 = vlaneseq
    %v368 = vshrl.u32 %v367, 7
    %v369 = vsub.s32 0, %v368
    %v370 = vrot.slane %v365, %v369
    %v388 = vunpack.c.l.b16 %v348
    %v389 = vunpack.c.l.b16 %v349
    %v390 = vunpack.c.l.b16 %v350
    %v391 = vunpack.c.l.b16 %v351
    %v392 = vunpack.c.l.b16 %v352
    %v393 = vunpack.c.l.b16 %v353
    %v394 = vunpack.c.l.b16 %v354
    %v395 = vunpack.c.l.b16 %v355
    %v396 = vunpack.c.l.b16 %v356
    %v397 = vunpack.c.l.b16 %v357
    %v398 = vunpack.c.l.b16 %v358
    %v399 = vunpack.c.l.b16 %v359
    %v400 = vunpack.c.l.b16 %v360
    %v401 = vunpack.c.l.b16 %v361
    %v402 = vunpack.c.l.b16 %v362
    %v403 = vunpack.c.l.b16 %v363
    %v404 = vpack.c.b16 %v389, %v388
    %v405 = vpack.c.b16 %v391, %v390
    %v406 = vpack.c.b16 %v393, %v392
    %v407 = vpack.c.b16 %v395, %v394
    %v408 = vpack.c.b16 %v397, %v396
    %v409 = vpack.c.b16 %v399, %v398
    %v410 = vpack.c.b16 %v401, %v400
    %v411 = vpack.c.b16 %v403, %v402
    %420 = vmatprep.subr.bf16.mxu0 0
    %421 = vmatpush1.bf16.msra.mxu0 %v404
    %422 = vmatprep.subr.bf16.mxu0 0
    %423 = vmatpush1.bf16.msra.mxu0 %v405
    %424 = vmatprep.subr.bf16.mxu0 0
    %425 = vmatpush1.bf16.msra.mxu0 %v406
    %426 = vmatprep.subr.bf16.mxu0 0
    %427 = vmatpush1.bf16.msra.mxu0 %v407
    %428 = vmatprep.subr.bf16.mxu0 0
    %429 = vmatpush1.bf16.msra.mxu0 %v408
    %430 = vmatprep.subr.bf16.mxu0 0
    %431 = vmatpush1.bf16.msra.mxu0 %v409
    %432 = vmatprep.subr.bf16.mxu0 0
    %433 = vmatpush1.bf16.msra.mxu0 %v410
    %434 = vmatprep.subr.bf16.mxu0 0
    %435 = vmatpush1.bf16.msra.mxu0 %v411
    %436 = vmatprep.subr.bf16.mxu0 0
    %437 = vmatpush1.bf16.msra.mxu0 0
    %438 = vmatprep.subr.bf16.mxu0 0
    %439 = vmatpush1.bf16.msra.mxu0 0
    %440 = vmatprep.subr.bf16.mxu0 0
    %441 = vmatpush1.bf16.msra.mxu0 0
    %442 = vmatprep.subr.bf16.mxu0 0
    %443 = vmatpush1.bf16.msra.mxu0 0
    %444 = vmatprep.subr.bf16.mxu0 0
    %445 = vmatpush1.bf16.msra.mxu0 0
    %446 = vmatprep.subr.bf16.mxu0 0
    %447 = vmatpush1.bf16.msra.mxu0 0
    %448 = vmatprep.subr.bf16.mxu0 0
    %449 = vmatpush1.bf16.msra.mxu0 0
    %450 = vmatprep.subr.bf16.mxu0 0
    %451 = vmatpush1.bf16.msra.mxu0 0
    %452 = vmatprep.mubr.bf16.mxu0 0
    %453 = vmatmul.mubr.bf16.gmra.mrb[0].mxu0 %v346
    %v454 = vpop.f32.mrb[0].mxu0
    %v455 = vadd.f32 %v370, %v454
    %v456 = vpop.f32.mrb[0].mxu0
    %v457 = vpop.f32.mrb[0].mxu0
    %v458 = vadd.f32 %v370, %v457
    %v459 = vpop.f32.mrb[0].mxu0
    %460 = vdwg.mxu0
    %v461 = vmax.f32 %v455, 0.0
    %v462 = vmax.f32 %v458, 0.0
    %v463 = vpack.c.bf16 %v462, %v461
    %s464 = scalar_lea.vmem [#allocation7], 64
    %v465 = vld [vmem:[%s464] sm:$0xf]
    %v466 = vld [vmem:[%s464 + $0x4] sm:$0xf]
    %v467 = vld [vmem:[%s464 + $0x8] sm:$0xf]
    %v468 = vld [vmem:[%s464 + $0xc] sm:$0xf]
    %v469 = vld [vmem:[%s464 + $0x10] sm:$0xf]
    %v470 = vld [vmem:[%s464 + $0x14] sm:$0xf]
    %v471 = vld [vmem:[%s464 + $0x18] sm:$0xf]
    %v472 = vld [vmem:[%s464 + $0x1c] sm:$0xf]
    %v473 = vld [vmem:[%s464 + $0x20] sm:$0xf]
    %v474 = vld [vmem:[%s464 + $0x24] sm:$0xf]
    %v475 = vld [vmem:[%s464 + $0x28] sm:$0xf]
    %v476 = vld [vmem:[%s464 + $0x2c] sm:$0xf]
    %v477 = vld [vmem:[%s464 + $0x30] sm:$0xf]
    %v478 = vld [vmem:[%s464 + $0x34] sm:$0xf]
    %v479 = vld [vmem:[%s464 + $0x38] sm:$0xf]
    %v480 = vld [vmem:[%s464 + $0x3c] sm:$0xf]
    %s481 = scalar_lea.vmem %s4, 1
    %v482 = vld [vmem:[%s481] sm:$0x1]
    %v484 = vlaneseq
    %v485 = vshrl.u32 %v484, 7
    %v486 = vsub.s32 0, %v485
    %v487 = vrot.slane %v482, %v486
    %v505 = vunpack.c.l.b16 %v465
    %v506 = vunpack.c.l.b16 %v466
    %v507 = vunpack.c.l.b16 %v467
    %v508 = vunpack.c.l.b16 %v468
    %v509 = vunpack.c.l.b16 %v469
    %v510 = vunpack.c.l.b16 %v470
    %v511 = vunpack.c.l.b16 %v471
    %v512 = vunpack.c.l.b16 %v472
    %v513 = vunpack.c.l.b16 %v473
    %v514 = vunpack.c.l.b16 %v474
    %v515 = vunpack.c.l.b16 %v475
    %v516 = vunpack.c.l.b16 %v476
    %v517 = vunpack.c.l.b16 %v477
    %v518 = vunpack.c.l.b16 %v478
    %v519 = vunpack.c.l.b16 %v479
    %v520 = vunpack.c.l.b16 %v480
    %v521 = vpack.c.b16 %v506, %v505
    %v522 = vpack.c.b16 %v508, %v507
    %v523 = vpack.c.b16 %v510, %v509
    %v524 = vpack.c.b16 %v512, %v511
    %v525 = vpack.c.b16 %v514, %v513
    %v526 = vpack.c.b16 %v516, %v515
    %v527 = vpack.c.b16 %v518, %v517
    %v528 = vpack.c.b16 %v520, %v519
    %537 = vmatprep.subr.bf16.mxu0 0
    %538 = vmatpush1.bf16.msra.mxu0 %v521
    %539 = vmatprep.subr.bf16.mxu0 0
    %540 = vmatpush1.bf16.msra.mxu0 %v522
    %541 = vmatprep.subr.bf16.mxu0 0
    %542 = vmatpush1.bf16.msra.mxu0 %v523
    %543 = vmatprep.subr.bf16.mxu0 0
    %544 = vmatpush1.bf16.msra.mxu0 %v524
    %545 = vmatprep.subr.bf16.mxu0 0
    %546 = vmatpush1.bf16.msra.mxu0 %v525
    %547 = vmatprep.subr.bf16.mxu0 0
    %548 = vmatpush1.bf16.msra.mxu0 %v526
    %549 = vmatprep.subr.bf16.mxu0 0
    %550 = vmatpush1.bf16.msra.mxu0 %v527
    %551 = vmatprep.subr.bf16.mxu0 0
    %552 = vmatpush1.bf16.msra.mxu0 %v528
    %553 = vmatprep.subr.bf16.mxu0 0
    %554 = vmatpush1.bf16.msra.mxu0 0
    %555 = vmatprep.subr.bf16.mxu0 0
    %556 = vmatpush1.bf16.msra.mxu0 0
    %557 = vmatprep.subr.bf16.mxu0 0
    %558 = vmatpush1.bf16.msra.mxu0 0
    %559 = vmatprep.subr.bf16.mxu0 0
    %560 = vmatpush1.bf16.msra.mxu0 0
    %561 = vmatprep.subr.bf16.mxu0 0
    %562 = vmatpush1.bf16.msra.mxu0 0
    %563 = vmatprep.subr.bf16.mxu0 0
    %564 = vmatpush1.bf16.msra.mxu0 0
    %565 = vmatprep.subr.bf16.mxu0 0
    %566 = vmatpush1.bf16.msra.mxu0 0
    %567 = vmatprep.subr.bf16.mxu0 0
    %568 = vmatpush1.bf16.msra.mxu0 0
    %569 = vmatprep.mubr.bf16.mxu0 0
    %570 = vmatmul.mubr.bf16.gmra.mrb[0].mxu0 %v463
    %v571 = vpop.f32.mrb[0].mxu0
    %v572 = vadd.f32 %v487, %v571
    %v573 = vpop.f32.mrb[0].mxu0
    %v574 = vpop.f32.mrb[0].mxu0
    %v575 = vadd.f32 %v487, %v574
    %v576 = vpop.f32.mrb[0].mxu0
    %577 = vdwg.mxu0
    %v578 = vadd.f32 %v344, %v572
    %v579 = vadd.f32 %v345, %v575
    %580 = vadd.xlane.f32.xlu0 %v578
    %v581 = vpop.xlane.xlu0 %580
    %582 = vadd.xlane.f32.xlu0 %v579
    %v583 = vpop.xlane.xlu0 %582
    %v584 = vmul.f32 %v581, 0.03125
    %v585 = vmul.f32 %v583, 0.03125
    %v586 = vsub.f32 %v578, %v584
    %v587 = vsub.f32 %v579, %v585
    %v588 = vsel %vm73, %v586, 0.0
    %v589 = vsel %vm73, %v587, 0.0
    %v590 = vmul.f32 %v588, %v588
    %v591 = vmul.f32 %v589, %v589
    %592 = vadd.xlane.f32.xlu0 %v590
    %v593 = vpop.xlane.xlu0 %592
    %594 = vadd.xlane.f32.xlu0 %v591
    %v595 = vpop.xlane.xlu0 %594
    %v596 = vmul.f32 %v593, 0.03125
    %v597 = vmul.f32 %v595, 0.03125
    %v598 = vadd.f32 %v596, 1e-05
    %v599 = vadd.f32 %v597, 1e-05
    %v600 = vrsqrt.pop %v598
    %v601 = vrsqrt.pop %v599
    %v602 = vmul.f32 %v588, %v600
    %v603 = vmul.f32 %v589, %v601
    %s604 = scalar_lea.vmem %s5, 1
    %v605 = vld [vmem:[%s604] sm:$0x1]
    %v607 = vlaneseq
    %v608 = vshrl.u32 %v607, 7
    %v609 = vsub.s32 0, %v608
    %v610 = vrot.slane %v605, %v609
    %v612 = vmul.f32 %v602, %v610
    %v613 = vmul.f32 %v603, %v610
    %s614 = scalar_lea.vmem %s6, 1
    %v615 = vld [vmem:[%s614] sm:$0x1]
    %v617 = vlaneseq
    %v618 = vshrl.u32 %v617, 7
    %v619 = vsub.s32 0, %v618
    %v620 = vrot.slane %v615, %v619
    %v622 = vadd.f32 %v612, %v620
    %v623 = vadd.f32 %v613, %v620
    %624 = vst [vmem:[#allocation8] sm:$0xff] %v622
    %625 = vst [vmem:[#allocation8 + $0x8] sm:$0xff] %v623
    // Predicated region
    $region42: #{tpu_custom_call.1} parent=1 // pred_check
      _
    $region43: #{tpu_custom_call.1} parent=1 // pred_check_branch
      %627 = sbr.rel (0) target = $region45
    $region44: #{tpu_custom_call.1} parent=1 // pred_region
      %s629 = ssub.s32 256, 256
      %630 = vsyncadd [#allocation4], %s629
      %s631 = sshll.u32 [#allocation8], 4
      %s632 = int_to_ptr.vmem [resolvable:$true] %s631
      %637 = dma.vmem_to_hbm [thread:$0]  %s632, 256, %s7, [#allocation4], 128, 128, 8
    $region45: #{tpu_custom_call.1} parent=1 // pred_fallthru
      _
    // Predicated region
    $region46: #{tpu_custom_call.1} parent=1 // pred_check
      _
    $region47: #{tpu_custom_call.1} parent=1 // pred_check_branch
      %639 = sbr.rel (0) target = $region49
    $region48: #{tpu_custom_call.1} parent=1 // pred_region
      %640 = dma.done [#allocation4], 256
    $region49: #{tpu_custom_call.1} parent=1 // pred_fallthru
      _
    %641 = vsyncpa [#allocation3], 1
    %642 = vsyncpa [#allocation6], 1
    %643 = vsyncpa [#allocation4], 1

</llo_original>
